<compile_context>
chip_gen: v6e
topology: v6e:2x2x1
jax: 0.10.0
libtpu: 0.0.40
codegen_flags: <defaults>
</compile_context>

<pallas_src>
import jax
import jax.numpy as jnp
from jax.experimental import pallas as pl
from jax.experimental.pallas import tpu as pltpu

BN_EPS = 1e-5
LEAKY_SLOPE = 0.01  # PyTorch nn.LeakyReLU default negative_slope


def _round_up(n, m):
    return ((n + m - 1) // m) * m


# ---------------------------------------------------------------------------
# Kernel
# ---------------------------------------------------------------------------
def neims_block_kernel(x_ref, s1_ref, t1_ref, w1_ref, t2_ref, w2_ref, b2_ref,
                       o_ref):
    # in_batch_norm (eval, running stats) folded to per-feature scale/shift.
    h = x_ref[...] * s1_ref[...] + t1_ref[...]
    # in_activation: LeakyReLU.  dropout: identity in eval mode.
    h = jnp.where(h > 0, h, LEAKY_SLOPE * h)
    # in_linear with out_batch_norm scale folded into W1's columns and
    # (in_linear bias + BN shift) folded into t2.  bf16 operands -> MXU peak,
    # f32 accumulation via preferred_element_type.
    z = jnp.dot(h.astype(jnp.bfloat16), w1_ref[...],
                preferred_element_type=jnp.float32)
    z = z + t2_ref[...]
    # out_activation: LeakyReLU.
    z = jnp.where(z > 0, z, LEAKY_SLOPE * z)
    # out_linear.
    o = jnp.dot(z.astype(jnp.bfloat16), w2_ref[...],
                preferred_element_type=jnp.float32)
    o = o + b2_ref[...]
    o_ref[...] = o.astype(o_ref.dtype)


# ---------------------------------------------------------------------------
# One-time parameter preparation (hoisted out of the per-call hot path)
# ---------------------------------------------------------------------------
def prepare_neims_params(bn_in_gamma, bn_in_beta, bn_in_mean, bn_in_var,
                         w_in, b_in,
                         bn_out_gamma, bn_out_beta, bn_out_mean, bn_out_var,
                         w_out, b_out):
    """Fold BatchNorms, transpose/pad weights, cast to bf16 — done ONCE."""
    f32 = jnp.float32
    BOT, IN = w_in.shape          # PyTorch Linear layout (out_features, in_features)
    OUT = w_out.shape[0]

    # BatchNorm folds (eval mode, running statistics).
    s1 = (bn_in_gamma * jax.lax.rsqrt(bn_in_var.astype(f32) + BN_EPS)).astype(f32)
    t1 = (bn_in_beta - bn_in_mean * s1).astype(f32)
    s2 = (bn_out_gamma * jax.lax.rsqrt(bn_out_var.astype(f32) + BN_EPS)).astype(f32)
    # s2*(h@W1ᵀ + b_in) + (beta - mean*s2)  ==  h@(W1ᵀ*s2) + t2
    t2 = ((bn_out_beta - bn_out_mean * s2) + s2 * b_in).astype(f32)

    # Lane-dense padding: feature axes -> multiples of 128 (padded lanes are
    # exactly zero so results are exact and get sliced off).
    INp, BOTp, OUTp = _round_up(IN, 128), _round_up(BOT, 128), _round_up(OUT, 128)
    pad_vec = lambda v, n: jnp.pad(v.astype(f32), (0, n - v.shape[0])).reshape(1, n)

    # Fold s2 into W1 columns (commutes through the matmul output axis).
    w1_folded = w_in.T.astype(f32) * s2[None, :]
    w1p = jnp.pad(w1_folded, ((0, INp - IN), (0, BOTp - BOT))).astype(jnp.bfloat16)
    w2p = jnp.pad(w_out.T.astype(f32),
                  ((0, BOTp - BOT), (0, OUTp - OUT))).astype(jnp.bfloat16)

    params = {
        "s1": pad_vec(s1, INp), "t1": pad_vec(t1, INp),
        "w1": w1p, "t2": pad_vec(t2, BOTp),
        "w2": w2p, "b2": pad_vec(b_out, OUTp),
        "dims": (IN, BOT, OUT, INp, BOTp, OUTp),
    }
    # Materialize now so per-call latency never pays for this preprocessing.
    return jax.tree_util.tree_map(
        lambda a: jax.block_until_ready(a) if isinstance(a, jax.Array) else a,
        params)


# ---------------------------------------------------------------------------
# VMEM budgeting / tile selection
# ---------------------------------------------------------------------------
def _vmem_cap_bytes():
    try:
        info = pltpu.get_tpu_info()
        phys = getattr(info, "vmem_capacity_bytes", None)
        if phys:
            # ~96 MiB on v5e/v6e (128 MiB physical), ~48 MiB on v7x (64 MiB/TC).
            return int(0.75 * phys)
    except Exception:
        pass
    return 48 * 1024 * 1024  # conservative v7x-safe fallback


def _vmem_estimate_bytes(tm, INp, BOTp, OUTp):
    io = 2 * 4 * tm * (INp + OUTp)                 # x / out tiles (f32, double-buffered)
    weights = 2 * (INp * BOTp + BOTp * OUTp)       # bf16 weights, single-buffered
    vecs = 8 * 4 * (2 * INp + BOTp + OUTp)         # (1,N) rows pad to 8 sublanes
    inter = 4 * tm * (INp + 2 * BOTp + OUTp)       # f32 intermediates h, z, o
    inter += 2 * tm * (INp + BOTp)                 # bf16 matmul operand copies
    return io + weights + vecs + inter


def _pick_tm(B, INp, BOTp, OUTp, cap):
    if B < 128:
        return _round_up(max(B, 8), 8)
    tm = 512
    # Keep >=2 grid steps (one per v7x TensorCore) and fit the VMEM budget.
    while tm > 128 and (B <= tm or 2 * _vmem_estimate_bytes(tm, INp, BOTp, OUTp) > cap):
        tm //= 2
    return tm


# ---------------------------------------------------------------------------
# Per-call apply (only pads x, launches the fused kernel, slices padding off)
# ---------------------------------------------------------------------------
def neims_block_apply(x, params, *, training=False):
    if training:
        # TODO(synk): training-mode (dropout mask + batch-stat BN) not implemented.
        raise NotImplementedError("NeimsBlock Pallas kernel is eval-mode only.")

    IN, BOT, OUT, INp, BOTp, OUTp = params["dims"]
    B = x.shape[0]
    assert x.shape[1] == IN
    f32 = jnp.float32

    cap = _vmem_cap_bytes()
    tm = _pick_tm(B, INp, BOTp, OUTp, cap)
    Bp = _round_up(B, tm)
    xp = jnp.pad(x.astype(f32), ((0, Bp - B), (0, INp - IN)))

    est = _vmem_estimate_bytes(tm, INp, BOTp, OUTp)
    vmem_limit = int(min(cap, max(8 * 1024 * 1024, 2 * est)))

    # Grid-invariant operands: constant index_map + single buffer (no point
    # double-buffering something that never changes across grid steps).
    def resident(shape):
        return pl.BlockSpec(shape, lambda i: (0, 0),
                            pipeline_mode=pl.Buffered(1))

    out = pl.pallas_call(
        neims_block_kernel,
        out_shape=jax.ShapeDtypeStruct((Bp, OUTp), f32),
        grid=(Bp // tm,),
        in_specs=[
            pl.BlockSpec((tm, INp), lambda i: (i, 0)),   # x batch tile (pipelined)
            resident((1, INp)),                          # scale1
            resident((1, INp)),                          # shift1
            resident((INp, BOTp)),                       # W1 (transposed, *s2, bf16)
            resident((1, BOTp)),                         # shift2 (+ b_in folded)
            resident((BOTp, OUTp)),                      # W2 (transposed, bf16)
            resident((1, OUTp)),                         # b_out
        ],
        out_specs=pl.BlockSpec((tm, OUTp), lambda i: (i, 0)),
        compiler_params=pltpu.CompilerParams(
            dimension_semantics=("parallel",),           # batch axis -> megacore split
            vmem_limit_bytes=vmem_limit,
        ),
    )(xp, params["s1"], params["t1"], params["w1"], params["t2"],
      params["w2"], params["b2"])

    return out[:B, :OUT]


def neims_block(x,
                bn_in_gamma, bn_in_beta, bn_in_mean, bn_in_var,
                w_in, b_in,
                bn_out_gamma, bn_out_beta, bn_out_mean, bn_out_var,
                w_out, b_out,
                *, training=False):
    """Convenience one-shot wrapper (prepare + apply)."""
    params = prepare_neims_params(bn_in_gamma, bn_in_beta, bn_in_mean, bn_in_var,
                                  w_in, b_in,
                                  bn_out_gamma, bn_out_beta, bn_out_mean,
                                  bn_out_var, w_out, b_out)
    return neims_block_apply(x, params, training=training)


# ---------------------------------------------------------------------------
# Pure-JAX f32 reference (matches the PyTorch eval-mode forward)
# ---------------------------------------------------------------------------
def reference(x, g1, be1, m1, v1, w1, b1, g2, be2, m2, v2, w2, b2):
    h = g1 * (x - m1) / jnp.sqrt(v1 + BN_EPS) + be1
    h = jnp.where(h > 0, h, LEAKY_SLOPE * h)
    h = h @ w1.T + b1
    h = g2 * (h - m2) / jnp.sqrt(v2 + BN_EPS) + be2
    h = jnp.where(h > 0, h, LEAKY_SLOPE * h)
    return h @ w2.T + b2


if __name__ == "__main__":
    B, IN_DIM, OUT_DIM = 24, 48, 96
    BOTTLENECK = int(round(0.5 * OUT_DIM))   # bottleneck_factor = 0.5

    key = jax.random.PRNGKey(0)
    keys = jax.random.split(key, 5)
    x = jax.random.normal(keys[0], (B, IN_DIM), jnp.float32)

    def bn_params(k, n):
        ka, kb, kc, kd = jax.random.split(k, 4)
        gamma = 1.0 + 0.1 * jax.random.normal(ka, (n,), jnp.float32)
        beta = 0.1 * jax.random.normal(kb, (n,), jnp.float32)
        mean = 0.1 * jax.random.normal(kc, (n,), jnp.float32)
        var = 0.5 + jnp.abs(jax.random.normal(kd, (n,), jnp.float32))
        return gamma, beta, mean, var

    def linear_params(k, out_f, in_f):
        kw, kb = jax.random.split(k)
        bound = 1.0 / jnp.sqrt(jnp.float32(in_f))
        w = jax.random.uniform(kw, (out_f, in_f), jnp.float32,
                               minval=-bound, maxval=bound)   # PyTorch layout
        b = jax.random.uniform(kb, (out_f,), jnp.float32,
                               minval=-bound, maxval=bound)
        return w, b

    g1, be1, m1, v1 = bn_params(keys[1], IN_DIM)
    w1, b1 = linear_params(keys[2], BOTTLENECK, IN_DIM)
    g2, be2, m2, v2 = bn_params(keys[3], BOTTLENECK)
    w2, b2 = linear_params(keys[4], OUT_DIM, BOTTLENECK)

    # Prepare once (hoisted), apply per call.
    params = prepare_neims_params(g1, be1, m1, v1, w1, b1,
                                  g2, be2, m2, v2, w2, b2)
    out = neims_block_apply(x, params)
    out = jax.block_until_ready(out)

    ref = reference(x, g1, be1, m1, v1, w1, b1, g2, be2, m2, v2, w2, b2)
    assert out.shape == (B, OUT_DIM)
    # bf16 MXU operands (f32 accumulation) -> slightly looser tolerance than
    # the pure-f32 path; still tight enough to catch any fold/layout bug.
    assert jnp.allclose(out, ref, atol=3e-2, rtol=3e-2), "mismatch vs reference"

    print("KERNEL_OK")
</pallas_src>

<mosaic_0001>
module attributes {stable_mosaic.version = 11 : i64} {
  func.func @neims_block_kernel(%arg0: i32, %arg1: memref<24x128xf32, #tpu.memory_space<vmem>>, %arg2: memref<1x128xf32, #tpu.memory_space<vmem>>, %arg3: memref<1x128xf32, #tpu.memory_space<vmem>>, %arg4: memref<128x128xbf16, #tpu.memory_space<vmem>>, %arg5: memref<1x128xf32, #tpu.memory_space<vmem>>, %arg6: memref<128x128xbf16, #tpu.memory_space<vmem>>, %arg7: memref<1x128xf32, #tpu.memory_space<vmem>>, %arg8: memref<24x128xf32, #tpu.memory_space<vmem>>) attributes {dimension_semantics = [#tpu.dimension_semantics<parallel>], iteration_bounds = array<i64: 1>, scalar_prefetch = 0 : i64, scratch_operands = 0 : i64, tpu.core_type = #tpu.core_type<tc>, window_params = [{transform_indices = @transform_0, window_bounds = array<i64: 24, 128>}, {pipeline_mode = #tpu.pipeline_mode<synchronous>, transform_indices = @transform_1, window_bounds = array<i64: 1, 128>}, {pipeline_mode = #tpu.pipeline_mode<synchronous>, transform_indices = @transform_2, window_bounds = array<i64: 1, 128>}, {pipeline_mode = #tpu.pipeline_mode<synchronous>, transform_indices = @transform_3, window_bounds = array<i64: 128, 128>}, {pipeline_mode = #tpu.pipeline_mode<synchronous>, transform_indices = @transform_4, window_bounds = array<i64: 1, 128>}, {pipeline_mode = #tpu.pipeline_mode<synchronous>, transform_indices = @transform_5, window_bounds = array<i64: 128, 128>}, {pipeline_mode = #tpu.pipeline_mode<synchronous>, transform_indices = @transform_6, window_bounds = array<i64: 1, 128>}, {transform_indices = @transform_7, window_bounds = array<i64: 24, 128>}]} {
    %c0 = arith.constant 0 : index
    %c0_0 = arith.constant 0 : index
    %0 = vector.load %arg1[%c0, %c0_0] : memref<24x128xf32, #tpu.memory_space<vmem>>, vector<24x128xf32>
    %c0_1 = arith.constant 0 : index
    %c0_2 = arith.constant 0 : index
    %1 = vector.load %arg2[%c0_1, %c0_2] : memref<1x128xf32, #tpu.memory_space<vmem>>, vector<1x128xf32>
    %2 = vector.broadcast %1 : vector<1x128xf32> to vector<24x128xf32>
    %3 = arith.mulf %0, %2 : vector<24x128xf32>
    %c0_3 = arith.constant 0 : index
    %c0_4 = arith.constant 0 : index
    %4 = vector.load %arg3[%c0_3, %c0_4] : memref<1x128xf32, #tpu.memory_space<vmem>>, vector<1x128xf32>
    %5 = vector.broadcast %4 : vector<1x128xf32> to vector<24x128xf32>
    %6 = arith.addf %3, %5 : vector<24x128xf32>
    %cst = arith.constant 0.000000e+00 : f32
    %7 = vector.broadcast %cst : f32 to vector<24x128xf32>
    %8 = arith.cmpf ogt, %6, %7 : vector<24x128xf32>
    %cst_5 = arith.constant 0.00999999977 : f32
    %9 = vector.broadcast %cst_5 : f32 to vector<24x128xf32>
    %10 = arith.mulf %9, %6 : vector<24x128xf32>
    %11 = arith.select %8, %6, %10 : vector<24x128xi1>, vector<24x128xf32>
    %12 = arith.truncf %11 : vector<24x128xf32> to vector<24x128xbf16>
    %c0_6 = arith.constant 0 : index
    %c0_7 = arith.constant 0 : index
    %13 = vector.load %arg4[%c0_6, %c0_7] : memref<128x128xbf16, #tpu.memory_space<vmem>>, vector<128x128xbf16>
    %cst_8 = arith.constant dense<0.000000e+00> : vector<24x128xf32>
    %14 = tpu.matmul %12, %13, %cst_8 {dimension_numbers = #tpu.dot_dimension_numbers<[1], [0], [0], [1], [0, 0, 1, 1], [], []>} : vector<24x128xbf16>, vector<128x128xbf16>, vector<24x128xf32> -> vector<24x128xf32>
    %c0_9 = arith.constant 0 : index
    %c0_10 = arith.constant 0 : index
    %15 = vector.load %arg5[%c0_9, %c0_10] : memref<1x128xf32, #tpu.memory_space<vmem>>, vector<1x128xf32>
    %16 = vector.broadcast %15 : vector<1x128xf32> to vector<24x128xf32>
    %17 = arith.addf %14, %16 : vector<24x128xf32>
    %cst_11 = arith.constant 0.000000e+00 : f32
    %18 = vector.broadcast %cst_11 : f32 to vector<24x128xf32>
    %19 = arith.cmpf ogt, %17, %18 : vector<24x128xf32>
    %cst_12 = arith.constant 0.00999999977 : f32
    %20 = vector.broadcast %cst_12 : f32 to vector<24x128xf32>
    %21 = arith.mulf %20, %17 : vector<24x128xf32>
    %22 = arith.select %19, %17, %21 : vector<24x128xi1>, vector<24x128xf32>
    %23 = arith.truncf %22 : vector<24x128xf32> to vector<24x128xbf16>
    %c0_13 = arith.constant 0 : index
    %c0_14 = arith.constant 0 : index
    %24 = vector.load %arg6[%c0_13, %c0_14] : memref<128x128xbf16, #tpu.memory_space<vmem>>, vector<128x128xbf16>
    %cst_15 = arith.constant dense<0.000000e+00> : vector<24x128xf32>
    %25 = tpu.matmul %23, %24, %cst_15 {dimension_numbers = #tpu.dot_dimension_numbers<[1], [0], [0], [1], [0, 0, 1, 1], [], []>} : vector<24x128xbf16>, vector<128x128xbf16>, vector<24x128xf32> -> vector<24x128xf32>
    %c0_16 = arith.constant 0 : index
    %c0_17 = arith.constant 0 : index
    %26 = vector.load %arg7[%c0_16, %c0_17] : memref<1x128xf32, #tpu.memory_space<vmem>>, vector<1x128xf32>
    %27 = vector.broadcast %26 : vector<1x128xf32> to vector<24x128xf32>
    %28 = arith.addf %25, %27 : vector<24x128xf32>
    %c0_18 = arith.constant 0 : index
    %c0_19 = arith.constant 0 : index
    %29 = vector.load %arg8[%c0_18, %c0_19] : memref<24x128xf32, #tpu.memory_space<vmem>>, vector<24x128xf32>
    tpu.vector_store %arg8[%c0_18, %c0_19], %28 {strides = array<i32>} : memref<24x128xf32, #tpu.memory_space<vmem>>, vector<24x128xf32>,
    return
  }
  func.func @transform_0(%arg0: i32) -> (i32, i32) {
    %c0_i32 = arith.constant 0 : i32
    %c0_i32_0 = arith.constant 0 : i32
    return %arg0, %c0_i32 : i32, i32
  }
  func.func @transform_1(%arg0: i32) -> (i32, i32) {
    %c0_i32 = arith.constant 0 : i32
    %c0_i32_0 = arith.constant 0 : i32
    %c0_i32_1 = arith.constant 0 : i32
    return %c0_i32, %c0_i32_0 : i32, i32
  }
  func.func @transform_2(%arg0: i32) -> (i32, i32) {
    %c0_i32 = arith.constant 0 : i32
    %c0_i32_0 = arith.constant 0 : i32
    %c0_i32_1 = arith.constant 0 : i32
    return %c0_i32, %c0_i32_0 : i32, i32
  }
  func.func @transform_3(%arg0: i32) -> (i32, i32) {
    %c0_i32 = arith.constant 0 : i32
    %c0_i32_0 = arith.constant 0 : i32
    %c0_i32_1 = arith.constant 0 : i32
    return %c0_i32, %c0_i32_0 : i32, i32
  }
  func.func @transform_4(%arg0: i32) -> (i32, i32) {
    %c0_i32 = arith.constant 0 : i32
    %c0_i32_0 = arith.constant 0 : i32
    %c0_i32_1 = arith.constant 0 : i32
    return %c0_i32, %c0_i32_0 : i32, i32
  }
  func.func @transform_5(%arg0: i32) -> (i32, i32) {
    %c0_i32 = arith.constant 0 : i32
    %c0_i32_0 = arith.constant 0 : i32
    %c0_i32_1 = arith.constant 0 : i32
    return %c0_i32, %c0_i32_0 : i32, i32
  }
  func.func @transform_6(%arg0: i32) -> (i32, i32) {
    %c0_i32 = arith.constant 0 : i32
    %c0_i32_0 = arith.constant 0 : i32
    %c0_i32_1 = arith.constant 0 : i32
    return %c0_i32, %c0_i32_0 : i32, i32
  }
  func.func @transform_7(%arg0: i32) -> (i32, i32) {
    %c0_i32 = arith.constant 0 : i32
    %c0_i32_0 = arith.constant 0 : i32
    return %arg0, %c0_i32 : i32, i32
  }
}

</mosaic_0001>

<llo_original>
// kernel: tpu_custom_call.1
$region0: #{tpu_custom_call.1}
  #allocation0 [shape = 'u32[]', space=smem, size = 0x4, offset = 0x4, fixed_abs, tag = 'smem constant byte address 0x4 - core index']
  #allocation1 [shape = 'u32[144,128]{1,0:T(1,128)}', space=vmem, size = 0x12000, scoped, tag = 'internal scratch']
  %s0 = inlined_call_operand.hbm [shape: f32[24,128], index: 0, kind: input, shape index: {}]
  %s1 = inlined_call_operand.vmem [shape: f32[1,128], index: 1, kind: input, shape index: {}]
  %s2 = inlined_call_operand.vmem [shape: f32[1,128], index: 2, kind: input, shape index: {}]
  %s3 = inlined_call_operand.hbm [shape: bf16[128,128], index: 3, kind: input, shape index: {}]
  %s4 = inlined_call_operand.vmem [shape: f32[1,128], index: 4, kind: input, shape index: {}]
  %s5 = inlined_call_operand.hbm [shape: bf16[128,128], index: 5, kind: input, shape index: {}]
  %s6 = inlined_call_operand.vmem [shape: f32[1,128], index: 6, kind: input, shape index: {}]
  %s7 = inlined_call_operand.hbm [shape: f32[24,128], index: 7, kind: output, shape index: {}]
  %s8 = sld [smem:[#allocation0]]
  $region50: #{tpu_custom_call.1} parent=0
    _
  %s10 = ssub.s32 1, %s8
  %s11 = scalar_select 0, %s10, %s8
  $region1: #{tpu_custom_call.1} parent=0
    #allocation2 [shape = 'u8[12288]{0}', space=vmem, size = 0x3000, scoped, tag = 'input window, operand 0, single buffered']
    #allocation3 [shape = 's32[1]{0}', space=sflag, size = 0x4, scoped, tag = 'scoped memory for tpu_custom_call.1']
    #allocation4 [shape = 's32[1]{0}', space=sflag, size = 0x4, scoped, tag = 'scoped memory for tpu_custom_call.1']
    #allocation5 [shape = 'u8[32768]{0}', space=vmem, size = 0x8000, scoped, tag = 'input window, operand 3, single buffered']
    #allocation6 [shape = 's32[1]{0}', space=sflag, size = 0x4, scoped, tag = 'scoped memory for tpu_custom_call.1']
    #allocation7 [shape = 'u8[32768]{0}', space=vmem, size = 0x8000, scoped, tag = 'input window, operand 5, single buffered']
    #allocation8 [shape = 'u8[12288]{0}', space=vmem, size = 0x3000, scoped, tag = 'output window, operand 0, single buffered']
    %12 = vsyncpa [#allocation3], 0
    %13 = vsyncpa [#allocation6], 0
    %14 = vsyncpa [#allocation4], 0
    // Predicated region
    $region2: #{tpu_custom_call.1} parent=1 // pred_check
      _
    $region3: #{tpu_custom_call.1} parent=1 // pred_check_branch
      %16 = sbr.rel (0) target = $region5
    $region4: #{tpu_custom_call.1} parent=1 // pred_region
      %s18 = ssub.s32 384, 384
      %19 = vsyncadd [#allocation3], %s18
      %s20 = sshll.u32 [#allocation2], 4
      %s21 = int_to_ptr.vmem [resolvable:$true] %s20
      %26 = dma.hbm_to_vmem [thread:$0]  %s0, 384, %s21, [#allocation3], 128, 128, 8
    $region5: #{tpu_custom_call.1} parent=1 // pred_fallthru
      _
    // Predicated region
    $region6: #{tpu_custom_call.1} parent=1 // pred_check
      _
    $region7: #{tpu_custom_call.1} parent=1 // pred_check_branch
      %28 = sbr.rel (0) target = $region9
    $region8: #{tpu_custom_call.1} parent=1 // pred_region
      _
    $region9: #{tpu_custom_call.1} parent=1 // pred_fallthru
      _
    // Predicated region
    $region10: #{tpu_custom_call.1} parent=1 // pred_check
      _
    $region11: #{tpu_custom_call.1} parent=1 // pred_check_branch
      %30 = sbr.rel (0) target = $region13
    $region12: #{tpu_custom_call.1} parent=1 // pred_region
      _
    $region13: #{tpu_custom_call.1} parent=1 // pred_fallthru
      _
    // Predicated region
    $region14: #{tpu_custom_call.1} parent=1 // pred_check
      _
    $region15: #{tpu_custom_call.1} parent=1 // pred_check_branch
      %32 = sbr.rel (0) target = $region17
    $region16: #{tpu_custom_call.1} parent=1 // pred_region
      %s34 = ssub.s32 1024, 1024
      %35 = vsyncadd [#allocation6], %s34
      %s36 = sshll.u32 [#allocation5], 4
      %s37 = int_to_ptr.vmem [resolvable:$true] %s36
      %42 = dma.hbm_to_vmem [thread:$0]  %s3, 1024, %s37, [#allocation6], 64, 64, 4
    $region17: #{tpu_custom_call.1} parent=1 // pred_fallthru
      _
    // Predicated region
    $region18: #{tpu_custom_call.1} parent=1 // pred_check
      _
    $region19: #{tpu_custom_call.1} parent=1 // pred_check_branch
      %44 = sbr.rel (0) target = $region21
    $region20: #{tpu_custom_call.1} parent=1 // pred_region
      _
    $region21: #{tpu_custom_call.1} parent=1 // pred_fallthru
      _
    // Predicated region
    $region22: #{tpu_custom_call.1} parent=1 // pred_check
      _
    $region23: #{tpu_custom_call.1} parent=1 // pred_check_branch
      %46 = sbr.rel (0) target = $region25
    $region24: #{tpu_custom_call.1} parent=1 // pred_region
      %s48 = ssub.s32 1024, 1024
      %49 = vsyncadd [#allocation6], %s48
      %s50 = sshll.u32 [#allocation7], 4
      %s51 = int_to_ptr.vmem [resolvable:$true] %s50
      %56 = dma.hbm_to_vmem [thread:$0]  %s5, 1024, %s51, [#allocation6], 64, 64, 4
    $region25: #{tpu_custom_call.1} parent=1 // pred_fallthru
      _
    // Predicated region
    $region26: #{tpu_custom_call.1} parent=1 // pred_check
      _
    $region27: #{tpu_custom_call.1} parent=1 // pred_check_branch
      %58 = sbr.rel (0) target = $region29
    $region28: #{tpu_custom_call.1} parent=1 // pred_region
      _
    $region29: #{tpu_custom_call.1} parent=1 // pred_fallthru
      _
    // Predicated region
    $region30: #{tpu_custom_call.1} parent=1 // pred_check
      _
    $region31: #{tpu_custom_call.1} parent=1 // pred_check_branch
      %60 = sbr.rel (0) target = $region33
    $region32: #{tpu_custom_call.1} parent=1 // pred_region
      %61 = dma.done [#allocation3], 384
    $region33: #{tpu_custom_call.1} parent=1 // pred_fallthru
      _
    // Predicated region
    $region34: #{tpu_custom_call.1} parent=1 // pred_check
      _
    $region35: #{tpu_custom_call.1} parent=1 // pred_check_branch
      %63 = sbr.rel (0) target = $region37
    $region36: #{tpu_custom_call.1} parent=1 // pred_region
      %64 = dma.done [#allocation6], 1024
    $region37: #{tpu_custom_call.1} parent=1 // pred_fallthru
      _
    // Predicated region
    $region38: #{tpu_custom_call.1} parent=1 // pred_check
      _
    $region39: #{tpu_custom_call.1} parent=1 // pred_check_branch
      %66 = sbr.rel (0) target = $region41
    $region40: #{tpu_custom_call.1} parent=1 // pred_region
      %67 = dma.done [#allocation6], 1024
    $region41: #{tpu_custom_call.1} parent=1 // pred_fallthru
      _
    %v69 = vld [vmem:[#allocation2] sm:$0xff]
    %v70 = vld [vmem:[#allocation2 + $0x8] sm:$0xff]
    %v71 = vld [vmem:[#allocation2 + $0x10] sm:$0xff]
    %v72 = vld [vmem:[%s1] sm:$0x1]
    %v74 = vlaneseq
    %v75 = vshrl.u32 %v74, 7
    %v76 = vsub.s32 0, %v75
    %v77 = vrot.slane %v72, %v76
    %v79 = vmul.f32 %v69, %v77
    %v80 = vmul.f32 %v70, %v77
    %v81 = vmul.f32 %v71, %v77
    %v82 = vld [vmem:[%s2] sm:$0x1]
    %v84 = vlaneseq
    %v85 = vshrl.u32 %v84, 7
    %v86 = vsub.s32 0, %v85
    %v87 = vrot.slane %v82, %v86
    %v89 = vadd.f32 %v79, %v87
    %v90 = vadd.f32 %v80, %v87
    %v91 = vadd.f32 %v81, %v87
    %vm92 = vcmp.gt.f32.partialorder %v89, 0.0
    %vm93 = vcmp.gt.f32.partialorder %v90, 0.0
    %vm94 = vcmp.gt.f32.partialorder %v91, 0.0
    %v95 = vmul.f32 %v89, 0.01
    %v96 = vmul.f32 %v90, 0.01
    %v97 = vmul.f32 %v91, 0.01
    %v98 = vsel %vm92, %v89, %v95
    %v99 = vsel %vm93, %v90, %v96
    %v100 = vsel %vm94, %v91, %v97
    %v101 = vpack.c.bf16 %v99, %v98
    %v102 = vpack.c.bf16 %v100, %v100
    %v103 = vld [vmem:[#allocation5] sm:$0xf]
    %v104 = vld [vmem:[#allocation5 + $0x4] sm:$0xf]
    %v105 = vld [vmem:[#allocation5 + $0x8] sm:$0xf]
    %v106 = vld [vmem:[#allocation5 + $0xc] sm:$0xf]
    %v107 = vld [vmem:[#allocation5 + $0x10] sm:$0xf]
    %v108 = vld [vmem:[#allocation5 + $0x14] sm:$0xf]
    %v109 = vld [vmem:[#allocation5 + $0x18] sm:$0xf]
    %v110 = vld [vmem:[#allocation5 + $0x1c] sm:$0xf]
    %v111 = vld [vmem:[#allocation5 + $0x20] sm:$0xf]
    %v112 = vld [vmem:[#allocation5 + $0x24] sm:$0xf]
    %v113 = vld [vmem:[#allocation5 + $0x28] sm:$0xf]
    %v114 = vld [vmem:[#allocation5 + $0x2c] sm:$0xf]
    %v115 = vld [vmem:[#allocation5 + $0x30] sm:$0xf]
    %v116 = vld [vmem:[#allocation5 + $0x34] sm:$0xf]
    %v117 = vld [vmem:[#allocation5 + $0x38] sm:$0xf]
    %v118 = vld [vmem:[#allocation5 + $0x3c] sm:$0xf]
    %v119 = vld [vmem:[%s4] sm:$0x1]
    %v121 = vlaneseq
    %v122 = vshrl.u32 %v121, 7
    %v123 = vsub.s32 0, %v122
    %v124 = vrot.slane %v119, %v123
    %v142 = vunpack.c.l.b16 %v103
    %v143 = vunpack.c.l.b16 %v104
    %v144 = vunpack.c.l.b16 %v105
    %v145 = vunpack.c.l.b16 %v106
    %v146 = vunpack.c.l.b16 %v107
    %v147 = vunpack.c.l.b16 %v108
    %v148 = vunpack.c.l.b16 %v109
    %v149 = vunpack.c.l.b16 %v110
    %v150 = vunpack.c.l.b16 %v111
    %v151 = vunpack.c.l.b16 %v112
    %v152 = vunpack.c.l.b16 %v113
    %v153 = vunpack.c.l.b16 %v114
    %v154 = vunpack.c.l.b16 %v115
    %v155 = vunpack.c.l.b16 %v116
    %v156 = vunpack.c.l.b16 %v117
    %v157 = vunpack.c.l.b16 %v118
    %v158 = vpack.c.b16 %v143, %v142
    %v159 = vpack.c.b16 %v145, %v144
    %v160 = vpack.c.b16 %v147, %v146
    %v161 = vpack.c.b16 %v149, %v148
    %v162 = vpack.c.b16 %v151, %v150
    %v163 = vpack.c.b16 %v153, %v152
    %v164 = vpack.c.b16 %v155, %v154
    %v165 = vpack.c.b16 %v157, %v156
    %174 = vmatprep.subr.bf16.mxu0 0
    %175 = vmatpush1.bf16.msra.mxu0 %v165
    %176 = vmatprep.subr.bf16.mxu0 0
    %177 = vmatpush1.bf16.msra.mxu0 %v164
    %178 = vmatprep.subr.bf16.mxu0 0
    %179 = vmatpush1.bf16.msra.mxu0 %v163
    %180 = vmatprep.subr.bf16.mxu0 0
    %181 = vmatpush1.bf16.msra.mxu0 %v162
    %182 = vmatprep.subr.bf16.mxu0 0
    %183 = vmatpush1.bf16.msra.mxu0 %v161
    %184 = vmatprep.subr.bf16.mxu0 0
    %185 = vmatpush1.bf16.msra.mxu0 %v160
    %186 = vmatprep.subr.bf16.mxu0 0
    %187 = vmatpush1.bf16.msra.mxu0 %v159
    %188 = vmatprep.subr.bf16.mxu0 0
    %189 = vmatpush1.bf16.msra.mxu0 %v158
    %190 = vmatprep.subr.bf16.mxu0 0
    %191 = vmatpush2.bf16.msra.mxu0 0
    %192 = vmatprep.subr.bf16.mxu0 0
    %193 = vmatpush2.bf16.msra.mxu0 0
    %194 = vmatprep.subr.bf16.mxu0 0
    %195 = vmatpush2.bf16.msra.mxu0 0
    %196 = vmatprep.subr.bf16.mxu0 0
    %197 = vmatpush2.bf16.msra.mxu0 0
    %198 = vmatprep.subr.bf16.mxu0 0
    %199 = vmatpush2.bf16.msra.mxu0 0
    %200 = vmatprep.subr.bf16.mxu0 0
    %201 = vmatpush2.bf16.msra.mxu0 0
    %202 = vmatprep.subr.bf16.mxu0 0
    %203 = vmatpush2.bf16.msra.mxu0 0
    %204 = vmatprep.subr.bf16.mxu0 0
    %205 = vmatpush2.bf16.msra.mxu0 0
    %206 = vmatprep.mubr.bf16.mxu0 0
    %207 = vmatmul.mubr.bf16.gmra.mxu0 %v101
    %v208 = vpop.f32.mrf.mxu0
    %v209 = vadd.f32 %v124, %v208
    %v210 = vpop.f32.mrf.mxu0
    %v211 = vpop.f32.mrf.mxu0
    %v212 = vadd.f32 %v124, %v211
    %v213 = vpop.f32.mrf.mxu0
    %214 = vmatprep.mubr.bf16.mxu0 0
    %215 = vmatmul.mubr.bf16.gmra.mxu0 %v102
    %v216 = vpop.f32.mrf.mxu0
    %v217 = vadd.f32 %v124, %v216
    %v218 = vpop.f32.mrf.mxu0
    %v219 = vpop.f32.mrf.mxu0
    %v220 = vpop.f32.mrf.mxu0
    %221 = vdwg.mxu0
    %vm222 = vcmp.gt.f32.partialorder %v209, 0.0
    %vm223 = vcmp.gt.f32.partialorder %v212, 0.0
    %vm224 = vcmp.gt.f32.partialorder %v217, 0.0
    %v225 = vmul.f32 %v209, 0.01
    %v226 = vmul.f32 %v212, 0.01
    %v227 = vmul.f32 %v217, 0.01
    %v228 = vsel %vm222, %v209, %v225
    %v229 = vsel %vm223, %v212, %v226
    %v230 = vsel %vm224, %v217, %v227
    %v231 = vpack.c.bf16 %v229, %v228
    %v232 = vpack.c.bf16 %v230, %v230
    %v233 = vld [vmem:[#allocation7] sm:$0xf]
    %v234 = vld [vmem:[#allocation7 + $0x4] sm:$0xf]
    %v235 = vld [vmem:[#allocation7 + $0x8] sm:$0xf]
    %v236 = vld [vmem:[#allocation7 + $0xc] sm:$0xf]
    %v237 = vld [vmem:[#allocation7 + $0x10] sm:$0xf]
    %v238 = vld [vmem:[#allocation7 + $0x14] sm:$0xf]
    %v239 = vld [vmem:[#allocation7 + $0x18] sm:$0xf]
    %v240 = vld [vmem:[#allocation7 + $0x1c] sm:$0xf]
    %v241 = vld [vmem:[#allocation7 + $0x20] sm:$0xf]
    %v242 = vld [vmem:[#allocation7 + $0x24] sm:$0xf]
    %v243 = vld [vmem:[#allocation7 + $0x28] sm:$0xf]
    %v244 = vld [vmem:[#allocation7 + $0x2c] sm:$0xf]
    %v245 = vld [vmem:[#allocation7 + $0x30] sm:$0xf]
    %v246 = vld [vmem:[#allocation7 + $0x34] sm:$0xf]
    %v247 = vld [vmem:[#allocation7 + $0x38] sm:$0xf]
    %v248 = vld [vmem:[#allocation7 + $0x3c] sm:$0xf]
    %v249 = vld [vmem:[%s6] sm:$0x1]
    %v251 = vlaneseq
    %v252 = vshrl.u32 %v251, 7
    %v253 = vsub.s32 0, %v252
    %v254 = vrot.slane %v249, %v253
    %v272 = vunpack.c.l.b16 %v233
    %v273 = vunpack.c.l.b16 %v234
    %v274 = vunpack.c.l.b16 %v235
    %v275 = vunpack.c.l.b16 %v236
    %v276 = vunpack.c.l.b16 %v237
    %v277 = vunpack.c.l.b16 %v238
    %v278 = vunpack.c.l.b16 %v239
    %v279 = vunpack.c.l.b16 %v240
    %v280 = vunpack.c.l.b16 %v241
    %v281 = vunpack.c.l.b16 %v242
    %v282 = vunpack.c.l.b16 %v243
    %v283 = vunpack.c.l.b16 %v244
    %v284 = vunpack.c.l.b16 %v245
    %v285 = vunpack.c.l.b16 %v246
    %v286 = vunpack.c.l.b16 %v247
    %v287 = vunpack.c.l.b16 %v248
    %v288 = vpack.c.b16 %v273, %v272
    %v289 = vpack.c.b16 %v275, %v274
    %v290 = vpack.c.b16 %v277, %v276
    %v291 = vpack.c.b16 %v279, %v278
    %v292 = vpack.c.b16 %v281, %v280
    %v293 = vpack.c.b16 %v283, %v282
    %v294 = vpack.c.b16 %v285, %v284
    %v295 = vpack.c.b16 %v287, %v286
    %304 = vmatprep.subr.bf16.mxu0 0
    %305 = vmatpush1.bf16.msra.mxu0 %v295
    %306 = vmatprep.subr.bf16.mxu0 0
    %307 = vmatpush1.bf16.msra.mxu0 %v294
    %308 = vmatprep.subr.bf16.mxu0 0
    %309 = vmatpush1.bf16.msra.mxu0 %v293
    %310 = vmatprep.subr.bf16.mxu0 0
    %311 = vmatpush1.bf16.msra.mxu0 %v292
    %312 = vmatprep.subr.bf16.mxu0 0
    %313 = vmatpush1.bf16.msra.mxu0 %v291
    %314 = vmatprep.subr.bf16.mxu0 0
    %315 = vmatpush1.bf16.msra.mxu0 %v290
    %316 = vmatprep.subr.bf16.mxu0 0
    %317 = vmatpush1.bf16.msra.mxu0 %v289
    %318 = vmatprep.subr.bf16.mxu0 0
    %319 = vmatpush1.bf16.msra.mxu0 %v288
    %320 = vmatprep.subr.bf16.mxu0 0
    %321 = vmatpush2.bf16.msra.mxu0 0
    %322 = vmatprep.subr.bf16.mxu0 0
    %323 = vmatpush2.bf16.msra.mxu0 0
    %324 = vmatprep.subr.bf16.mxu0 0
    %325 = vmatpush2.bf16.msra.mxu0 0
    %326 = vmatprep.subr.bf16.mxu0 0
    %327 = vmatpush2.bf16.msra.mxu0 0
    %328 = vmatprep.subr.bf16.mxu0 0
    %329 = vmatpush2.bf16.msra.mxu0 0
    %330 = vmatprep.subr.bf16.mxu0 0
    %331 = vmatpush2.bf16.msra.mxu0 0
    %332 = vmatprep.subr.bf16.mxu0 0
    %333 = vmatpush2.bf16.msra.mxu0 0
    %334 = vmatprep.subr.bf16.mxu0 0
    %335 = vmatpush2.bf16.msra.mxu0 0
    %336 = vmatprep.mubr.bf16.mxu0 0
    %337 = vmatmul.mubr.bf16.gmra.mxu0 %v231
    %v338 = vpop.f32.mrf.mxu0
    %v339 = vadd.f32 %v254, %v338
    %v340 = vpop.f32.mrf.mxu0
    %v341 = vpop.f32.mrf.mxu0
    %v342 = vadd.f32 %v254, %v341
    %v343 = vpop.f32.mrf.mxu0
    %344 = vmatprep.mubr.bf16.mxu0 0
    %345 = vmatmul.mubr.bf16.gmra.mxu0 %v232
    %v346 = vpop.f32.mrf.mxu0
    %v347 = vadd.f32 %v254, %v346
    %v348 = vpop.f32.mrf.mxu0
    %v349 = vpop.f32.mrf.mxu0
    %v350 = vpop.f32.mrf.mxu0
    %351 = vdwg.mxu0
    %352 = vst [vmem:[#allocation8] sm:$0xff] %v339
    %353 = vst [vmem:[#allocation8 + $0x8] sm:$0xff] %v342
    %354 = vst [vmem:[#allocation8 + $0x10] sm:$0xff] %v347
    // Predicated region
    $region42: #{tpu_custom_call.1} parent=1 // pred_check
      _
    $region43: #{tpu_custom_call.1} parent=1 // pred_check_branch
      %356 = sbr.rel (0) target = $region45
    $region44: #{tpu_custom_call.1} parent=1 // pred_region
      %s358 = ssub.s32 384, 384
      %359 = vsyncadd [#allocation4], %s358
      %s360 = sshll.u32 [#allocation8], 4
      %s361 = int_to_ptr.vmem [resolvable:$true] %s360
      %366 = dma.vmem_to_hbm [thread:$0]  %s361, 384, %s7, [#allocation4], 128, 128, 8
    $region45: #{tpu_custom_call.1} parent=1 // pred_fallthru
      _
    // Predicated region
    $region46: #{tpu_custom_call.1} parent=1 // pred_check
      _
    $region47: #{tpu_custom_call.1} parent=1 // pred_check_branch
      %368 = sbr.rel (0) target = $region49
    $region48: #{tpu_custom_call.1} parent=1 // pred_region
      %369 = dma.done [#allocation4], 384
    $region49: #{tpu_custom_call.1} parent=1 // pred_fallthru
      _
    %370 = vsyncpa [#allocation3], 1
    %371 = vsyncpa [#allocation6], 1
    %372 = vsyncpa [#allocation4], 1

</llo_original>
